<compile_context>
chip_gen: v7x
topology: tpu7x:2x2x1
jax: 0.10.0
libtpu: 0.0.40
codegen_flags: <defaults>
</compile_context>

<pallas_src>
import functools

import jax
import jax.numpy as jnp
from jax import lax
from jax.experimental import pallas as pl
from jax.experimental.pallas import tpu as pltpu


def _snn_kernel(x_ref, w1_ref, b1_ref, w2_ref, b2_ref, o_ref):
    # fc1: (TB, D) @ (D, H) on the MXU with f32 accumulation; bias + ReLU on the VPU.
    h = jnp.dot(x_ref[...], w1_ref[...], preferred_element_type=jnp.float32)
    h = jnp.maximum(h + b1_ref[...].astype(jnp.float32), 0.0)

    # Dropout(p=0.8): identity in eval / inference mode.
    # TODO(synk): training-mode dropout would use pltpu.prng_seed / prng_random_bits.

    # fc2 (out_features = 1): contract the (1, H) weight row against h over H,
    # producing a lane-dense (1, TB) result directly on the MXU.  This avoids both
    # a lane-sparse (TB, 1) store (masked vst + strided writeback) and any XLU
    # cross-lane reduction.
    y_row = lax.dot_general(
        w2_ref[...].astype(jnp.float32), h,
        dimension_numbers=(((1,), (1,)), ((), ())),
        preferred_element_type=jnp.float32)                       # (1, TB)

    # Scalar fc2 bias read from SMEM, broadcast-added on the VPU.
    o_ref[...] = (y_row + b2_ref[0]).astype(o_ref.dtype)[None]    # (1, 1, TB)


def _round_up(n, m):
    return ((n + m - 1) // m) * m


@functools.partial(jax.jit, static_argnames=("tb",))
def snn_forward(x, w1, b1, w2_row, b2, *, tb=1024):
    """x: (B, D); w1: (D, H); b1: (1, H); w2_row: (1, H); b2: (1,) -> (B, 1) f32."""
    B, D = x.shape
    H = w1.shape[1]

    # Batch tile: multiple of 8 (f32 sublane packing); tiny batches stay one block.
    tb = max(8, min(tb, _round_up(B, 8)))
    # v7x has 2 TensorCores: ensure the "parallel" batch axis has >= 2 grid steps
    # when the batch allows it (neutral on single-TC v5e/v6e; ~0.35us/step overhead).
    if B > 8:
        tb = min(tb, max(8, _round_up(pl.cdiv(B, 2), 8)))
    num_tiles = pl.cdiv(B, tb)

    flops = 2 * B * D * H + 2 * B * H
    bytes_accessed = (x.size * x.dtype.itemsize
                      + w1.size * w1.dtype.itemsize
                      + b1.size * b1.dtype.itemsize
                      + w2_row.size * w2_row.dtype.itemsize
                      + b2.size * b2.dtype.itemsize
                      + num_tiles * tb * 4)

    out = pl.pallas_call(
        _snn_kernel,
        out_shape=jax.ShapeDtypeStruct((num_tiles, 1, tb), jnp.float32),
        grid_spec=pltpu.PrefetchScalarGridSpec(
            num_scalar_prefetch=0,
            grid=(num_tiles,),
            in_specs=[
                pl.BlockSpec((tb, D), lambda i: (i, 0)),            # x: batch-tiled (ragged ok)
                pl.BlockSpec((D, H), lambda i: (0, 0)),             # w1: resident
                pl.BlockSpec((1, H), lambda i: (0, 0)),             # b1: resident
                pl.BlockSpec((1, H), lambda i: (0, 0)),             # w2 row: resident
                pl.BlockSpec(memory_space=pltpu.MemorySpace.SMEM),  # b2: scalar in SMEM
            ],
            out_specs=pl.BlockSpec((1, 1, tb), lambda i: (i, 0, 0)),  # lane-dense output
        ),
        compiler_params=pltpu.CompilerParams(
            dimension_semantics=("parallel",),
        ),
        cost_estimate=pl.CostEstimate(
            flops=flops, transcendentals=0, bytes_accessed=bytes_accessed),
    )(x, w1, b1, w2_row, b2)

    # (num_tiles, 1, tb) -> (num_tiles*tb, 1) -> (B, 1).  Tile-major row order is
    # preserved: tile i, lane j  <->  global row i*tb + j.
    return out.reshape(num_tiles * tb, 1)[:B]


def init_params(key, input_size, hidden_size):
    """Deterministic PyTorch-style (Kaiming-uniform-ish) Linear init."""
    k1, k2, k3, k4 = jax.random.split(key, 4)
    bound1 = 1.0 / jnp.sqrt(input_size)
    bound2 = 1.0 / jnp.sqrt(hidden_size)
    w1 = jax.random.uniform(k1, (input_size, hidden_size), jnp.float32,
                            minval=-bound1, maxval=bound1)
    b1 = jax.random.uniform(k2, (1, hidden_size), jnp.float32,
                            minval=-bound1, maxval=bound1)
    w2_row = jax.random.uniform(k3, (1, hidden_size), jnp.float32,
                                minval=-bound2, maxval=bound2)
    b2 = jax.random.uniform(k4, (1,), jnp.float32,
                            minval=-bound2, maxval=bound2)
    return w1, b1, w2_row, b2


if __name__ == "__main__":
    key = jax.random.PRNGKey(0)
    batch = 8
    input_size = 32
    hidden_size = 256  # module default

    kx, kp = jax.random.split(key)
    x = jax.random.normal(kx, (batch, input_size), jnp.float32)
    w1, b1, w2_row, b2 = init_params(kp, input_size, hidden_size)

    out = jax.block_until_ready(snn_forward(x, w1, b1, w2_row, b2))

    # Pure-JAX reference (eval-mode dropout == identity; no output activation).
    h_ref = jnp.maximum(
        jnp.dot(x, w1, precision=lax.Precision.HIGHEST) + b1, 0.0)
    y_ref = jnp.dot(h_ref, w2_row.T, precision=lax.Precision.HIGHEST) + b2
    assert out.shape == (batch, 1)
    assert jnp.allclose(out, y_ref, atol=1e-2, rtol=1e-2)

    # Ragged, multi-grid-step path: B=300, tb=128 -> grid=(3,), no host-side pad,
    # last input block is ragged and the discarded tail rows never reach the output.
    x_big = jax.random.normal(kx, (300, input_size), jnp.float32)
    out_big = jax.block_until_ready(snn_forward(x_big, w1, b1, w2_row, b2, tb=128))
    h_big = jnp.maximum(
        jnp.dot(x_big, w1, precision=lax.Precision.HIGHEST) + b1, 0.0)
    y_big = jnp.dot(h_big, w2_row.T, precision=lax.Precision.HIGHEST) + b2
    assert out_big.shape == (300, 1)
    assert jnp.allclose(out_big, y_big, atol=1e-2, rtol=1e-2)

    print("KERNEL_OK")
</pallas_src>

<mosaic_0001>
module attributes {stable_mosaic.version = 11 : i64} {
  func.func @_snn_kernel(%arg0: i32, %arg1: memref<8x32xf32, #tpu.memory_space<vmem>>, %arg2: memref<32x256xf32, #tpu.memory_space<vmem>>, %arg3: memref<1x256xf32, #tpu.memory_space<vmem>>, %arg4: memref<1x256xf32, #tpu.memory_space<vmem>>, %arg5: memref<1xf32, #tpu.memory_space<smem>>, %arg6: memref<1x1x8xf32, #tpu.memory_space<vmem>>) attributes {dimension_semantics = [#tpu.dimension_semantics<parallel>], iteration_bounds = array<i64: 1>, scalar_prefetch = 0 : i64, scratch_operands = 0 : i64, tpu.core_type = #tpu.core_type<tc>, window_params = [{transform_indices = @transform_0, window_bounds = array<i64: 8, 32>}, {pipeline_mode = #tpu.pipeline_mode<synchronous>, transform_indices = @transform_1, window_bounds = array<i64: 32, 256>}, {pipeline_mode = #tpu.pipeline_mode<synchronous>, transform_indices = @transform_2, window_bounds = array<i64: 1, 256>}, {pipeline_mode = #tpu.pipeline_mode<synchronous>, transform_indices = @transform_3, window_bounds = array<i64: 1, 256>}, {transform_indices = @transform_4, window_bounds = array<i64: 1>}, {transform_indices = @transform_5, window_bounds = array<i64: 1, 1, 8>}]} {
    %c0 = arith.constant 0 : index
    %c0_0 = arith.constant 0 : index
    %0 = vector.load %arg1[%c0, %c0_0] : memref<8x32xf32, #tpu.memory_space<vmem>>, vector<8x32xf32>
    %c0_1 = arith.constant 0 : index
    %c0_2 = arith.constant 0 : index
    %1 = vector.load %arg2[%c0_1, %c0_2] : memref<32x256xf32, #tpu.memory_space<vmem>>, vector<32x256xf32>
    %cst = arith.constant dense<0.000000e+00> : vector<8x256xf32>
    %2 = tpu.matmul %0, %1, %cst {dimension_numbers = #tpu.dot_dimension_numbers<[1], [0], [0], [1], [0, 0, 1, 1], [], []>} : vector<8x32xf32>, vector<32x256xf32>, vector<8x256xf32> -> vector<8x256xf32>
    %c0_3 = arith.constant 0 : index
    %c0_4 = arith.constant 0 : index
    %3 = vector.load %arg3[%c0_3, %c0_4] : memref<1x256xf32, #tpu.memory_space<vmem>>, vector<1x256xf32>
    %4 = vector.broadcast %3 : vector<1x256xf32> to vector<8x256xf32>
    %5 = arith.addf %2, %4 : vector<8x256xf32>
    %cst_5 = arith.constant 0.000000e+00 : f32
    %6 = vector.broadcast %cst_5 : f32 to vector<8x256xf32>
    %7 = arith.maximumf %5, %6 : vector<8x256xf32>
    %c0_6 = arith.constant 0 : index
    %c0_7 = arith.constant 0 : index
    %8 = vector.load %arg4[%c0_6, %c0_7] : memref<1x256xf32, #tpu.memory_space<vmem>>, vector<1x256xf32>
    %cst_8 = arith.constant dense<0.000000e+00> : vector<1x8xf32>
    %9 = tpu.matmul %8, %7, %cst_8 {dimension_numbers = #tpu.dot_dimension_numbers<[1], [1], [0], [0], [0, 0, 1, 0], [], []>} : vector<1x256xf32>, vector<8x256xf32>, vector<1x8xf32> -> vector<1x8xf32>
    %c0_9 = arith.constant 0 : index
    %10 = memref.load %arg5[%c0_9] : memref<1xf32, #tpu.memory_space<smem>>
    %11 = vector.broadcast %10 : f32 to vector<1x8xf32>
    %12 = arith.addf %9, %11 : vector<1x8xf32>
    %13 = vector.shape_cast %12 : vector<1x8xf32> to vector<1x1x8xf32>
    %c0_10 = arith.constant 0 : index
    %c0_11 = arith.constant 0 : index
    %c0_12 = arith.constant 0 : index
    %14 = vector.load %arg6[%c0_10, %c0_11, %c0_12] : memref<1x1x8xf32, #tpu.memory_space<vmem>>, vector<1x1x8xf32>
    tpu.vector_store %arg6[%c0_10, %c0_11, %c0_12], %13 {strides = array<i32>} : memref<1x1x8xf32, #tpu.memory_space<vmem>>, vector<1x1x8xf32>,
    return
  }
  func.func @transform_0(%arg0: i32) -> (i32, i32) {
    %c0_i32 = arith.constant 0 : i32
    %c0_i32_0 = arith.constant 0 : i32
    return %arg0, %c0_i32 : i32, i32
  }
  func.func @transform_1(%arg0: i32) -> (i32, i32) {
    %c0_i32 = arith.constant 0 : i32
    %c0_i32_0 = arith.constant 0 : i32
    %c0_i32_1 = arith.constant 0 : i32
    return %c0_i32, %c0_i32_0 : i32, i32
  }
  func.func @transform_2(%arg0: i32) -> (i32, i32) {
    %c0_i32 = arith.constant 0 : i32
    %c0_i32_0 = arith.constant 0 : i32
    %c0_i32_1 = arith.constant 0 : i32
    return %c0_i32, %c0_i32_0 : i32, i32
  }
  func.func @transform_3(%arg0: i32) -> (i32, i32) {
    %c0_i32 = arith.constant 0 : i32
    %c0_i32_0 = arith.constant 0 : i32
    %c0_i32_1 = arith.constant 0 : i32
    return %c0_i32, %c0_i32_0 : i32, i32
  }
  func.func @transform_4(%arg0: i32) -> i32 {
    %c0_i32 = arith.constant 0 : i32
    %c0_i32_0 = arith.constant 0 : i32
    return %c0_i32 : i32
  }
  func.func @transform_5(%arg0: i32) -> (i32, i32, i32) {
    %c0_i32 = arith.constant 0 : i32
    %c0_i32_0 = arith.constant 0 : i32
    %c0_i32_1 = arith.constant 0 : i32
    return %arg0, %c0_i32, %c0_i32_0 : i32, i32, i32
  }
}

</mosaic_0001>

<llo_original>
// kernel: snn_forward.1
$region0: #{snn_forward.1}
  #allocation0 [shape = 'u32[]', space=smem, size = 0x4, offset = 0x4, fixed_abs, tag = 'smem constant byte address 0x4 - core index']
  #allocation1 [shape = 'u32[144,128]{1,0:T(1,128)}', space=vmem, size = 0x12000, scoped, tag = 'internal scratch']
  #allocation2 [shape = 'f32[1]{0:T(128)S(6)}', space=smem, size = 0x200, scoped, tag = 'scoped memory for snn_forward.1']
  %s0 = inlined_call_operand.hbm [shape: f32[8,32], index: 0, kind: input, shape index: {}]
  %s1 = inlined_call_operand.hbm [shape: f32[32,256], index: 1, kind: input, shape index: {}]
  %s2 = inlined_call_operand.vmem [shape: f32[1,256], index: 2, kind: input, shape index: {}]
  %s3 = inlined_call_operand.vmem [shape: f32[1,256], index: 3, kind: input, shape index: {}]
  %s4 = inlined_call_operand.<no memory space> [shape: f32[1], index: 4, kind: input, shape index: {}]
  %s5 = inlined_call_operand.hbm [shape: f32[1,1,8], index: 5, kind: output, shape index: {}]
  %s6 = sld [smem:[#allocation0]]
  $region38: #{snn_forward.1} parent=0
    _
  %s8 = ssub.s32 1, %s6
  %s9 = scalar_select 0, %s8, %s6
  %10 = sst [smem:[#allocation2]] %s4
  $region1: #{snn_forward.1} parent=0
    #allocation3 [shape = 'u8[4096]{0}', space=vmem, size = 0x1000, scoped, tag = 'input window, operand 0, single buffered']
    #allocation4 [shape = 's32[1]{0}', space=sflag, size = 0x4, scoped, tag = 'scoped memory for snn_forward.1']
    #allocation5 [shape = 's32[1]{0}', space=sflag, size = 0x4, scoped, tag = 'scoped memory for snn_forward.1']
    #allocation6 [shape = 'u8[32768]{0}', space=vmem, size = 0x8000, scoped, tag = 'input window, operand 1, single buffered']
    #allocation7 [shape = 's32[1]{0}', space=sflag, size = 0x4, scoped, tag = 'scoped memory for snn_forward.1']
    #allocation8 [shape = 'u8[512]{0}', space=vmem, size = 0x400, scoped, tag = 'output window, operand 0, single buffered']
    %11 = vsyncpa [#allocation4], 0
    %12 = vsyncpa [#allocation7], 0
    %13 = vsyncpa [#allocation5], 0
    // Predicated region
    $region2: #{snn_forward.1} parent=1 // pred_check
      _
    $region3: #{snn_forward.1} parent=1 // pred_check_branch
      %15 = sbr.rel (0) target = $region5
    $region4: #{snn_forward.1} parent=1 // pred_region
      %s17 = ssub.s32 128, 128
      %18 = vsyncadd [#allocation4], %s17
      %s20 = sshll.u32 [#allocation3], 4
      %s21 = int_to_ptr.vmem [resolvable:$true] %s20
      %23 = dma.hbm_to_vmem [thread:$0]  %s0, 128, %s21, [#allocation4]
    $region5: #{snn_forward.1} parent=1 // pred_fallthru
      _
    // Predicated region
    $region6: #{snn_forward.1} parent=1 // pred_check
      _
    $region7: #{snn_forward.1} parent=1 // pred_check_branch
      %25 = sbr.rel (0) target = $region9
    $region8: #{snn_forward.1} parent=1 // pred_region
      %s27 = ssub.s32 1024, 1024
      %28 = vsyncadd [#allocation7], %s27
      %s29 = sshll.u32 [#allocation6], 4
      %s30 = int_to_ptr.vmem [resolvable:$true] %s29
      %35 = dma.hbm_to_vmem [thread:$0]  %s1, 1024, %s30, [#allocation7], 256, 256, 16
    $region9: #{snn_forward.1} parent=1 // pred_fallthru
      _
    // Predicated region
    $region10: #{snn_forward.1} parent=1 // pred_check
      _
    $region11: #{snn_forward.1} parent=1 // pred_check_branch
      %37 = sbr.rel (0) target = $region13
    $region12: #{snn_forward.1} parent=1 // pred_region
      _
    $region13: #{snn_forward.1} parent=1 // pred_fallthru
      _
    // Predicated region
    $region14: #{snn_forward.1} parent=1 // pred_check
      _
    $region15: #{snn_forward.1} parent=1 // pred_check_branch
      %39 = sbr.rel (0) target = $region17
    $region16: #{snn_forward.1} parent=1 // pred_region
      _
    $region17: #{snn_forward.1} parent=1 // pred_fallthru
      _
    // Predicated region
    $region18: #{snn_forward.1} parent=1 // pred_check
      _
    $region19: #{snn_forward.1} parent=1 // pred_check_branch
      %41 = sbr.rel (0) target = $region21
    $region20: #{snn_forward.1} parent=1 // pred_region
      _
    $region21: #{snn_forward.1} parent=1 // pred_fallthru
      _
    // Predicated region
    $region22: #{snn_forward.1} parent=1 // pred_check
      _
    $region23: #{snn_forward.1} parent=1 // pred_check_branch
      %43 = sbr.rel (0) target = $region25
    $region24: #{snn_forward.1} parent=1 // pred_region
      %44 = dma.done [#allocation4], 128
    $region25: #{snn_forward.1} parent=1 // pred_fallthru
      _
    // Predicated region
    $region26: #{snn_forward.1} parent=1 // pred_check
      _
    $region27: #{snn_forward.1} parent=1 // pred_check_branch
      %46 = sbr.rel (0) target = $region29
    $region28: #{snn_forward.1} parent=1 // pred_region
      %47 = dma.done [#allocation7], 1024
    $region29: #{snn_forward.1} parent=1 // pred_fallthru
      _
    %v48 = vld [vmem:[#allocation3] sm:$0xff]
    %v49 = vld [vmem:[#allocation6] sm:$0xff]
    %v50 = vld [vmem:[#allocation6 + $0x8] sm:$0xff]
    %v51 = vld [vmem:[#allocation6 + $0x10] sm:$0xff]
    %v52 = vld [vmem:[#allocation6 + $0x18] sm:$0xff]
    %v53 = vld [vmem:[#allocation6 + $0x20] sm:$0xff]
    %v54 = vld [vmem:[#allocation6 + $0x28] sm:$0xff]
    %v55 = vld [vmem:[#allocation6 + $0x30] sm:$0xff]
    %v56 = vld [vmem:[#allocation6 + $0x38] sm:$0xff]
    %v57 = vld [vmem:[%s2] sm:$0x3]
    %v59 = vlaneseq
    %v60 = vshrl.u32 %v59, 7
    %v61 = vsub.s32 0, %v60
    %v62 = vrot.slane %v57, %v61
    %v63 = vlaneseq
    %v64 = vshrl.u32 %v63, 7
    %v65 = vsub.s32 1, %v64
    %v66 = vrot.slane %v57, %v65
    %vm69 = vcmask 261120
    %v71 = vsel %vm69, %v48, 0
    %73 = vmatprep.subr.mxu0 %v50
    %74 = vmatpush1.msra.mxu0 %v49
    %75 = vmatprep.subr.mxu0 %v52
    %76 = vmatpush1.msra.mxu0 %v51
    %77 = vmatprep.subr.mxu0 %v54
    %78 = vmatpush1.msra.mxu0 %v53
    %79 = vmatprep.subr.mxu0 %v56
    %80 = vmatpush1.msra.mxu0 %v55
    %81 = vmatprep.subr.mxu0 0.0
    %82 = vmatpush1.msra.mxu0 0.0
    %83 = vmatprep.subr.mxu0 0.0
    %84 = vmatpush1.msra.mxu0 0.0
    %85 = vmatprep.subr.mxu0 0.0
    %86 = vmatpush1.msra.mxu0 0.0
    %87 = vmatprep.subr.mxu0 0.0
    %88 = vmatpush1.msra.mxu0 0.0
    %89 = vmatprep.subr.mxu0 0.0
    %90 = vmatpush1.msra.mxu0 0.0
    %91 = vmatprep.subr.mxu0 0.0
    %92 = vmatpush1.msra.mxu0 0.0
    %93 = vmatprep.subr.mxu0 0.0
    %94 = vmatpush1.msra.mxu0 0.0
    %95 = vmatprep.subr.mxu0 0.0
    %96 = vmatpush1.msra.mxu0 0.0
    %97 = vmatprep.subr.mxu0 0.0
    %98 = vmatpush1.msra.mxu0 0.0
    %99 = vmatprep.subr.mxu0 0.0
    %100 = vmatpush1.msra.mxu0 0.0
    %101 = vmatprep.subr.mxu0 0.0
    %102 = vmatpush1.msra.mxu0 0.0
    %103 = vmatprep.subr.mxu0 0.0
    %104 = vmatpush1.msra.mxu0 0.0
    %105 = vmatprep.subr.mxu0 0.0
    %106 = vmatpush1.msra.mxu0 0.0
    %107 = vmatprep.subr.mxu0 0.0
    %108 = vmatpush1.msra.mxu0 0.0
    %109 = vmatprep.subr.mxu0 0.0
    %110 = vmatpush1.msra.mxu0 0.0
    %111 = vmatprep.subr.mxu0 0.0
    %112 = vmatpush1.msra.mxu0 0.0
    %113 = vmatprep.subr.mxu0 0.0
    %114 = vmatpush1.msra.mxu0 0.0
    %115 = vmatprep.subr.mxu0 0.0
    %116 = vmatpush1.msra.mxu0 0.0
    %117 = vmatprep.subr.mxu0 0.0
    %118 = vmatpush1.msra.mxu0 0.0
    %119 = vmatprep.subr.mxu0 0.0
    %120 = vmatpush1.msra.mxu0 0.0
    %121 = vmatprep.subr.mxu0 0.0
    %122 = vmatpush1.msra.mxu0 0.0
    %123 = vmatprep.subr.mxu0 0.0
    %124 = vmatpush1.msra.mxu0 0.0
    %125 = vmatprep.subr.mxu0 0.0
    %126 = vmatpush1.msra.mxu0 0.0
    %127 = vmatprep.subr.mxu0 0.0
    %128 = vmatpush1.msra.mxu0 0.0
    %129 = vmatprep.subr.mxu0 0.0
    %130 = vmatpush1.msra.mxu0 0.0
    %131 = vmatprep.subr.mxu0 0.0
    %132 = vmatpush1.msra.mxu0 0.0
    %133 = vmatprep.subr.mxu0 0.0
    %134 = vmatpush1.msra.mxu0 0.0
    %135 = vmatprep.subr.mxu0 0.0
    %136 = vmatpush1.msra.mxu0 0.0
    %137 = vmatprep.mubr.f32.mxu0 0.0
    %138 = vmatmul.mubr.f32.gmra.mrb[0].mxu0 %v71
    %v139 = vpop.f32.mrb[0].mxu0
    %v140 = vadd.f32 %v62, %v139
    %v141 = vpop.f32.mrb[0].mxu0
    %v142 = vadd.f32 %v66, %v141
    %143 = vdwg.mxu0
    %v144 = vmax.f32 %v140, 0.0
    %v145 = vmax.f32 %v142, 0.0
    %v146 = vld [vmem:[%s3] sm:$0x3]
    %s147 = sld [smem:[#allocation2]]
    %v148 = vstv %s147
    %v150 = vlaneseq
    %v151 = vshrl.u32 %v150, 7
    %v152 = vsub.s32 0, %v151
    %v153 = vrot.slane %v146, %v152
    %v154 = vlaneseq
    %v155 = vshrl.u32 %v154, 7
    %v156 = vsub.s32 1, %v155
    %v157 = vrot.slane %v146, %v156
    %160 = vmatprep.subr.mxu0 %v145
    %161 = vmatpush1.xpose.msra.mxu0 %v144
    %162 = vmatprep.subr.mxu0 0.0
    %163 = vmatpush1.xpose.msra.mxu0 0.0
    %164 = vmatprep.subr.mxu0 0.0
    %165 = vmatpush1.xpose.msra.mxu0 0.0
    %166 = vmatprep.subr.mxu0 0.0
    %167 = vmatpush1.xpose.msra.mxu0 0.0
    %168 = vmatprep.subr.mxu0 0.0
    %169 = vmatpush1.xpose.msra.mxu0 0.0
    %170 = vmatprep.subr.mxu0 0.0
    %171 = vmatpush1.xpose.msra.mxu0 0.0
    %172 = vmatprep.subr.mxu0 0.0
    %173 = vmatpush1.xpose.msra.mxu0 0.0
    %174 = vmatprep.subr.mxu0 0.0
    %175 = vmatpush1.xpose.msra.mxu0 0.0
    %176 = vmatprep.subr.mxu0 0.0
    %177 = vmatpush1.xpose.msra.mxu0 0.0
    %178 = vmatprep.subr.mxu0 0.0
    %179 = vmatpush1.xpose.msra.mxu0 0.0
    %180 = vmatprep.subr.mxu0 0.0
    %181 = vmatpush1.xpose.msra.mxu0 0.0
    %182 = vmatprep.subr.mxu0 0.0
    %183 = vmatpush1.xpose.msra.mxu0 0.0
    %184 = vmatprep.subr.mxu0 0.0
    %185 = vmatpush1.xpose.msra.mxu0 0.0
    %186 = vmatprep.subr.mxu0 0.0
    %187 = vmatpush1.xpose.msra.mxu0 0.0
    %188 = vmatprep.subr.mxu0 0.0
    %189 = vmatpush1.xpose.msra.mxu0 0.0
    %190 = vmatprep.subr.mxu0 0.0
    %191 = vmatpush1.xpose.msra.mxu0 0.0
    %192 = vmatprep.subr.mxu0 0.0
    %193 = vmatpush1.xpose.msra.mxu0 0.0
    %194 = vmatprep.subr.mxu0 0.0
    %195 = vmatpush1.xpose.msra.mxu0 0.0
    %196 = vmatprep.subr.mxu0 0.0
    %197 = vmatpush1.xpose.msra.mxu0 0.0
    %198 = vmatprep.subr.mxu0 0.0
    %199 = vmatpush1.xpose.msra.mxu0 0.0
    %200 = vmatprep.subr.mxu0 0.0
    %201 = vmatpush1.xpose.msra.mxu0 0.0
    %202 = vmatprep.subr.mxu0 0.0
    %203 = vmatpush1.xpose.msra.mxu0 0.0
    %204 = vmatprep.subr.mxu0 0.0
    %205 = vmatpush1.xpose.msra.mxu0 0.0
    %206 = vmatprep.subr.mxu0 0.0
    %207 = vmatpush1.xpose.msra.mxu0 0.0
    %208 = vmatprep.subr.mxu0 0.0
    %209 = vmatpush1.xpose.msra.mxu0 0.0
    %210 = vmatprep.subr.mxu0 0.0
    %211 = vmatpush1.xpose.msra.mxu0 0.0
    %212 = vmatprep.subr.mxu0 0.0
    %213 = vmatpush1.xpose.msra.mxu0 0.0
    %214 = vmatprep.subr.mxu0 0.0
    %215 = vmatpush1.xpose.msra.mxu0 0.0
    %216 = vmatprep.subr.mxu0 0.0
    %217 = vmatpush1.xpose.msra.mxu0 0.0
    %218 = vmatprep.subr.mxu0 0.0
    %219 = vmatpush1.xpose.msra.mxu0 0.0
    %220 = vmatprep.subr.mxu0 0.0
    %221 = vmatpush1.xpose.msra.mxu0 0.0
    %222 = vmatprep.subr.mxu0 0.0
    %223 = vmatpush1.xpose.msra.mxu0 0.0
    %224 = vmatprep.mubr.f32.mxu0 %v157
    %225 = vmatmul.mubr.f32.gmra.mrb[0].mxu0 %v153
    %v226 = vpop.f32.mrb[0].mxu0
    %v227 = vadd.f32 %v148, %v226
    %v228 = vpop.f32.mrb[0].mxu0
    %229 = vdwg.mxu0
    %vm230 = vcmask 57344
    %231 = vst.msk [vmem:[#allocation8] sm:$0x1] %vm230, %v227
    // Predicated region
    $region30: #{snn_forward.1} parent=1 // pred_check
      _
    $region31: #{snn_forward.1} parent=1 // pred_check_branch
      %233 = sbr.rel (0) target = $region33
    $region32: #{snn_forward.1} parent=1 // pred_region
      %s235 = ssub.s32 16, 16
      %236 = vsyncadd [#allocation5], %s235
      %s238 = sshll.u32 [#allocation8], 4
      %s239 = int_to_ptr.vmem [resolvable:$true] %s238
      %241 = dma.vmem_to_hbm [thread:$0]  %s239, 16, %s5, [#allocation5]
    $region33: #{snn_forward.1} parent=1 // pred_fallthru
      _
    // Predicated region
    $region34: #{snn_forward.1} parent=1 // pred_check
      _
    $region35: #{snn_forward.1} parent=1 // pred_check_branch
      %243 = sbr.rel (0) target = $region37
    $region36: #{snn_forward.1} parent=1 // pred_region
      %244 = dma.done [#allocation5], 16
    $region37: #{snn_forward.1} parent=1 // pred_fallthru
      _
    %245 = vsyncpa [#allocation4], 1
    %246 = vsyncpa [#allocation7], 1
    %247 = vsyncpa [#allocation5], 1

</llo_original>
